<compile_context>
chip_gen: v5e
topology: v5e:2x2
jax: 0.10.0
libtpu: 0.0.40
codegen_flags: <defaults>
</compile_context>

<pallas_src>
import math

import jax
import jax.numpy as jnp
from jax.experimental import pallas as pl
from jax.experimental.pallas import tpu as pltpu


def _affine_kernel(coef_ref, x_ref, o_ref):
    # coef_ref (SMEM, shape (2,), f32): a = 3*s, b = -4*s, with s in {0.5, 2.0}
    # chosen by the hoisted global-mean branch.  out = a*x + b  (1 vmul+1 vadd).
    a = coef_ref[0]
    b = coef_ref[1]
    o_ref[...] = (x_ref[...].astype(jnp.float32) * a + b).astype(o_ref.dtype)


def _pick_target_block_bytes():
    # ~4 MiB blocks are already near the HBM roofline on v5e/v6e; v7x (64 MiB
    # VMEM per TC, ~3.2 TB/s HBM) amortizes the ~0.35 us per-grid-step overhead
    # better with ~8 MiB blocks while 2x(in+out) double-buffering still fits.
    try:
        info = pltpu.get_tpu_info()
        if info.vmem_capacity_bytes <= 64 * 1024 * 1024:  # v7x-class TensorCore
            return 8 * 1024 * 1024
    except Exception:
        pass
    return 4 * 1024 * 1024


_TARGET_BLOCK_BYTES = _pick_target_block_bytes()


def _compiler_params(block_bytes):
    # Enough for double-buffered in + out blocks with headroom, capped so it is
    # safe on every generation (v7x has only 64 MiB physical VMEM per TC).
    vmem_limit = max(32 * 1024 * 1024, min(48 * 1024 * 1024, 6 * block_bytes))
    return pltpu.CompilerParams(
        dimension_semantics=("parallel",),
        vmem_limit_bytes=int(vmem_limit),
    )


def ptmodule_forward(x):
    """PtModule.forward semantics; same shape & dtype as x."""
    orig_shape = x.shape
    orig_dtype = x.dtype
    total = math.prod(orig_shape)
    itemsize = jnp.dtype(orig_dtype).itemsize
    # Minimum sublane multiple for native-dtype tiles:
    # (8,128) f32, (16,128) bf16, (32,128) int8/fp8.
    sub = {4: 8, 2: 16, 1: 32}.get(itemsize, 8)

    # ---- hoisted global branch (f32 reduction on native-dtype x) -----------
    # y = 3*x - 4  =>  mean(y) = 3*mean(x) - 4   (exact affine identity)
    mean_y = 3.0 * jnp.mean(x, dtype=jnp.float32) - 4.0
    s = jnp.where(mean_y > 10.0, 0.5, 2.0).astype(jnp.float32)
    # out = s*(3*x - 4) = (3*s)*x + (-4*s)
    coefs = jnp.stack([3.0 * s, -4.0 * s]).astype(jnp.float32)

    # ---- preferred path: lane-dense 2-D slab (rows, lane_w), no padding -----
    lane_w = 0
    for cand in (2048, 1024, 512, 256, 128):
        if total % cand == 0:
            lane_w = cand
            break

    if lane_w:
        rows = total // lane_w
        x2d = x.reshape(rows, lane_w)
        bytes_per_row = lane_w * itemsize
        cap_rows = max(sub, (_TARGET_BLOCK_BYTES // bytes_per_row) // sub * sub)

        if rows <= sub:
            tile_rows = rows  # tiny input: single full-extent block
        else:
            # >=2 tiles (DMA/compute overlap + v7x megacore), >=4 when possible.
            min_tiles = 4 if rows >= 4 * sub else 2
            even_rows = max(sub, (rows // min_tiles) // sub * sub)
            tile_rows = min(cap_rows, even_rows)
        n_tiles = pl.cdiv(rows, tile_rows)
        block_bytes = tile_rows * bytes_per_row

        out2d = pl.pallas_call(
            _affine_kernel,
            out_shape=jax.ShapeDtypeStruct((rows, lane_w), orig_dtype),
            grid=(n_tiles,),
            in_specs=[
                # Two scalar coefficients, whole array resident in SMEM.
                pl.BlockSpec(memory_space=pltpu.MemorySpace.SMEM),
                pl.BlockSpec((tile_rows, lane_w), lambda i: (i, 0)),
            ],
            out_specs=pl.BlockSpec((tile_rows, lane_w), lambda i: (i, 0)),
            compiler_params=_compiler_params(block_bytes),
        )(coefs, x2d)
        return out2d.reshape(orig_shape)

    # ---- fallback: ragged numel (not a multiple of 128) ---------------------
    # Tile the flat 1-D array directly; the final partial block is masked by
    # Pallas on writeback, so no HBM padding pass is needed.
    flat = x.reshape(-1)
    quant = sub * 128
    cap_elems = max(quant, (_TARGET_BLOCK_BYTES // itemsize) // quant * quant)
    if total <= quant:
        block_len = total  # single full-extent block
    else:
        min_tiles = 4 if total >= 4 * quant else 2
        even = max(quant, (total // min_tiles) // quant * quant)
        block_len = min(cap_elems, even)
    n_tiles = pl.cdiv(total, block_len)
    block_bytes = block_len * itemsize

    out_flat = pl.pallas_call(
        _affine_kernel,
        out_shape=jax.ShapeDtypeStruct((total,), orig_dtype),
        grid=(n_tiles,),
        in_specs=[
            pl.BlockSpec(memory_space=pltpu.MemorySpace.SMEM),
            pl.BlockSpec((block_len,), lambda i: (i,)),
        ],
        out_specs=pl.BlockSpec((block_len,), lambda i: (i,)),
        compiler_params=_compiler_params(block_bytes),
    )(coefs, flat)
    return out_flat.reshape(orig_shape)


if __name__ == "__main__":
    key = jax.random.PRNGKey(0)
    x = jax.random.normal(key, (2, 4, 16, 16), dtype=jnp.float32)

    fwd = jax.jit(ptmodule_forward)
    out = fwd(x)
    jax.block_until_ready(out)

    # Reference in plain JAX (same semantics as the PyTorch module).
    y_ref = (x + 2.0) * 3.0
    for i in range(5):
        y_ref = y_ref - i
    ref = jnp.where(jnp.mean(y_ref) > 10.0, y_ref / 2.0, y_ref * 2.0)

    assert out.shape == (2, 4, 16, 16)
    assert out.dtype == x.dtype
    assert jnp.allclose(out, ref, atol=1e-4, rtol=1e-5), "mismatch vs reference"

    print("KERNEL_OK")
</pallas_src>

<mosaic_0001>
module attributes {stable_mosaic.version = 11 : i64} {
  func.func @_affine_kernel(%arg0: i32, %arg1: memref<2xf32, #tpu.memory_space<smem>>, %arg2: memref<1x2048xf32, #tpu.memory_space<vmem>>, %arg3: memref<1x2048xf32, #tpu.memory_space<vmem>>) attributes {dimension_semantics = [#tpu.dimension_semantics<parallel>], iteration_bounds = array<i64: 1>, scalar_prefetch = 0 : i64, scratch_operands = 0 : i64, tpu.core_type = #tpu.core_type<tc>, window_params = [{transform_indices = @transform_0, window_bounds = array<i64: 2>}, {transform_indices = @transform_1, window_bounds = array<i64: 1, 2048>}, {transform_indices = @transform_2, window_bounds = array<i64: 1, 2048>}]} {
    %c0 = arith.constant 0 : index
    %0 = memref.load %arg1[%c0] : memref<2xf32, #tpu.memory_space<smem>>
    %c1 = arith.constant 1 : index
    %1 = memref.load %arg1[%c1] : memref<2xf32, #tpu.memory_space<smem>>
    %c0_0 = arith.constant 0 : index
    %c0_1 = arith.constant 0 : index
    %2 = vector.load %arg2[%c0_0, %c0_1] : memref<1x2048xf32, #tpu.memory_space<vmem>>, vector<1x2048xf32>
    %3 = vector.broadcast %0 : f32 to vector<1x2048xf32>
    %4 = arith.mulf %2, %3 : vector<1x2048xf32>
    %5 = vector.broadcast %1 : f32 to vector<1x2048xf32>
    %6 = arith.addf %4, %5 : vector<1x2048xf32>
    %c0_2 = arith.constant 0 : index
    %c0_3 = arith.constant 0 : index
    %7 = vector.load %arg3[%c0_2, %c0_3] : memref<1x2048xf32, #tpu.memory_space<vmem>>, vector<1x2048xf32>
    tpu.vector_store %arg3[%c0_2, %c0_3], %6 {strides = array<i32>} : memref<1x2048xf32, #tpu.memory_space<vmem>>, vector<1x2048xf32>,
    return
  }
  func.func @transform_0(%arg0: i32) -> i32 {
    %c0_i32 = arith.constant 0 : i32
    %c0_i32_0 = arith.constant 0 : i32
    return %c0_i32 : i32
  }
  func.func @transform_1(%arg0: i32) -> (i32, i32) {
    %c0_i32 = arith.constant 0 : i32
    %c0_i32_0 = arith.constant 0 : i32
    return %arg0, %c0_i32 : i32, i32
  }
  func.func @transform_2(%arg0: i32) -> (i32, i32) {
    %c0_i32 = arith.constant 0 : i32
    %c0_i32_0 = arith.constant 0 : i32
    return %arg0, %c0_i32 : i32, i32
  }
}

</mosaic_0001>

<llo_original>
// kernel: ptmodule_forward.1
$region0: #{ptmodule_forward.1}
  #allocation0 [shape = 'u32[]', space=smem, size = 0x4, offset = 0x4, fixed_abs, tag = 'smem constant byte address 0x4 - core index']
  #allocation1 [shape = 'u32[72,128]{1,0:T(1,128)}', space=vmem, size = 0x9000, scoped, tag = 'internal scratch']
  %s0 = inlined_call_operand.vmem [shape: f32[2], index: 0, kind: input, shape index: {}]
  %s1 = inlined_call_operand.vmem [shape: f32[1,2048], index: 1, kind: input, shape index: {}]
  %s2 = inlined_call_operand.vmem [shape: f32[1,2048], index: 2, kind: output, shape index: {}]
  %s3 = sld [smem:[#allocation0]]
  $region22: #{ptmodule_forward.1} parent=0
    _
  %s5 = ssub.s32 1, %s3
  %s6 = scalar_select 0, %s5, %s3
  $region1: #{ptmodule_forward.1} parent=0
    #allocation2 [shape = 'u8[512]{0}', space=smem, size = 0x200, scoped, tag = 'input window, operand 0, single buffered']
    #allocation3 [shape = 's32[1]{0}', space=sflag, size = 0x4, scoped, tag = 'scoped memory for ptmodule_forward.1']
    %7 = vsyncpa [#allocation3], 0
    // Predicated region
    $region2: #{ptmodule_forward.1} parent=1 // pred_check
      _
    $region3: #{ptmodule_forward.1} parent=1 // pred_check_branch
      %9 = sbr.rel (0) target = $region5
    $region4: #{ptmodule_forward.1} parent=1 // pred_region
      %11 = vsyncadd [#allocation3], 0
      %s13 = sshll.u32 %s0, 4
      %s14 = int_to_ptr.vmem [resolvable:$true] %s13
      %16 = dma.vmem_to_smem %s14, 16, [#allocation2], [#allocation3]
    $region5: #{ptmodule_forward.1} parent=1 // pred_fallthru
      _
    // Predicated region
    $region6: #{ptmodule_forward.1} parent=1 // pred_check
      _
    $region7: #{ptmodule_forward.1} parent=1 // pred_check_branch
      %18 = sbr.rel (0) target = $region9
    $region8: #{ptmodule_forward.1} parent=1 // pred_region
      _
    $region9: #{ptmodule_forward.1} parent=1 // pred_fallthru
      _
    // Predicated region
    $region10: #{ptmodule_forward.1} parent=1 // pred_check
      _
    $region11: #{ptmodule_forward.1} parent=1 // pred_check_branch
      %20 = sbr.rel (0) target = $region13
    $region12: #{ptmodule_forward.1} parent=1 // pred_region
      %22 = dma.done [#allocation3], 16
    $region13: #{ptmodule_forward.1} parent=1 // pred_fallthru
      _
    %23 = sfence
    %s24 = sld [smem:[#allocation2]]
    %s25 = sld [smem:[#allocation2 + $0x1]]
    %v26 = vld [vmem:[%s1] sm:$0xff]
    %v27 = vld [vmem:[%s1 + $0x8] sm:$0xff]
    %v28 = vstv %s24
    %v29 = vmul.f32 %v26, %v28
    %v30 = vmul.f32 %v27, %v28
    %v31 = vstv %s25
    %v32 = vadd.f32 %v29, %v31
    %v33 = vadd.f32 %v30, %v31
    %34 = vst [vmem:[%s2] sm:$0xff] %v32
    %35 = vst [vmem:[%s2 + $0x8] sm:$0xff] %v33
    // Predicated region
    $region14: #{ptmodule_forward.1} parent=1 // pred_check
      _
    $region15: #{ptmodule_forward.1} parent=1 // pred_check_branch
      %37 = sbr.rel (0) target = $region17
    $region16: #{ptmodule_forward.1} parent=1 // pred_region
      _
    $region17: #{ptmodule_forward.1} parent=1 // pred_fallthru
      _
    // Predicated region
    $region18: #{ptmodule_forward.1} parent=1 // pred_check
      _
    $region19: #{ptmodule_forward.1} parent=1 // pred_check_branch
      %39 = sbr.rel (0) target = $region21
    $region20: #{ptmodule_forward.1} parent=1 // pred_region
      _
    $region21: #{ptmodule_forward.1} parent=1 // pred_fallthru
      _
    %40 = vsyncpa [#allocation3], 1

</llo_original>
